<compile_context>
chip_gen: v6e
topology: v6e:2x2x1
jax: 0.10.0
libtpu: 0.0.40
codegen_flags: <defaults>
</compile_context>

<pallas_src>
import jax
import jax.numpy as jnp
from jax.experimental import pallas as pl
from jax.experimental.pallas import tpu as pltpu

IN_FEATURES = 150
HIDDEN = 50
OUT_FEATURES = 10
HIDDEN_PAD = 128   # lane-dense padded hidden width
OUT_PAD = 128      # lane-dense padded output width


def _round_up(n, m):
    return (n + m - 1) // m * m


def mlp_kernel(x_ref, w1_ref, b1_ref, w2_ref, b2_ref, o_ref):
    # fc1: (TB, 150) @ (150, 128) -> f32 accumulate on the MXU.
    h = jnp.dot(x_ref[...], w1_ref[...], preferred_element_type=jnp.float32)
    h = jnp.maximum(h + b1_ref[...], 0.0)                 # bias + ReLU in f32
    # fc2: cast hidden back to the weight dtype (bf16) for the second MXU pass.
    y = jnp.dot(h.astype(w2_ref.dtype), w2_ref[...],
                preferred_element_type=jnp.float32)
    o_ref[...] = jnp.maximum(y + b2_ref[...], 0.0).astype(o_ref.dtype)


def mlp_forward(x, w1, b1, w2, b2, *, tb=2048, use_bf16=True):
    """relu(relu(x @ w1 + b1) @ w2 + b2); w* are (in, out), b* are (out,)."""
    B, K = x.shape
    assert K == IN_FEATURES and w1.shape == (IN_FEATURES, HIDDEN)
    assert w2.shape == (HIDDEN, OUT_FEATURES)

    compute_dtype = jnp.bfloat16 if use_bf16 else jnp.float32

    # Pad feature dims once (weights are tiny; the padded copies live in VMEM
    # across all grid steps). Biases stay f32.
    w1p = jnp.zeros((IN_FEATURES, HIDDEN_PAD), compute_dtype)
    w1p = w1p.at[:, :HIDDEN].set(w1.astype(compute_dtype))
    b1p = jnp.zeros((1, HIDDEN_PAD), jnp.float32)
    b1p = b1p.at[:, :HIDDEN].set(b1.reshape(1, HIDDEN).astype(jnp.float32))
    w2p = jnp.zeros((HIDDEN_PAD, OUT_PAD), compute_dtype)
    w2p = w2p.at[:HIDDEN, :OUT_FEATURES].set(w2.astype(compute_dtype))
    b2p = jnp.zeros((1, OUT_PAD), jnp.float32)
    b2p = b2p.at[:, :OUT_FEATURES].set(b2.reshape(1, OUT_FEATURES).astype(jnp.float32))

    xc = x.astype(compute_dtype)

    # Batch tile: as large as VMEM comfortably allows, never larger than the
    # (8-aligned) batch. Batch is padded up to a whole number of tiles.
    tb_eff = min(tb, _round_up(B, 8))
    bp = _round_up(B, tb_eff)
    if bp != B:
        xc = jnp.pad(xc, ((0, bp - B), (0, 0)))
    num_blocks = bp // tb_eff

    dsize = jnp.dtype(compute_dtype).itemsize
    cost = pl.CostEstimate(
        flops=2 * bp * (IN_FEATURES * HIDDEN_PAD + HIDDEN_PAD * OUT_PAD),
        bytes_accessed=(bp * IN_FEATURES * dsize            # x read
                        + bp * OUT_PAD * 4                  # padded out write
                        + (w1p.size + w2p.size) * dsize     # resident weights
                        + (b1p.size + b2p.size) * 4),
        transcendentals=0,
    )

    out_pad = pl.pallas_call(
        mlp_kernel,
        out_shape=jax.ShapeDtypeStruct((bp, OUT_PAD), jnp.float32),
        grid_spec=pltpu.PrefetchScalarGridSpec(
            num_scalar_prefetch=0,
            grid=(num_blocks,),
            in_specs=[
                # x: tiled along batch -> pipelined HBM<->VMEM DMA per step.
                pl.BlockSpec((tb_eff, IN_FEATURES), lambda i: (i, 0)),
                # Weights/biases: constant block index -> fetched once,
                # VMEM-resident across all grid steps (no re-DMA).
                pl.BlockSpec((IN_FEATURES, HIDDEN_PAD), lambda i: (0, 0)),
                pl.BlockSpec((1, HIDDEN_PAD), lambda i: (0, 0)),
                pl.BlockSpec((HIDDEN_PAD, OUT_PAD), lambda i: (0, 0)),
                pl.BlockSpec((1, OUT_PAD), lambda i: (0, 0)),
            ],
            out_specs=pl.BlockSpec((tb_eff, OUT_PAD), lambda i: (i, 0)),
        ),
        compiler_params=pltpu.CompilerParams(
            dimension_semantics=("parallel",),       # 2x on v7x's 2 TCs
            vmem_limit_bytes=32 * 1024 * 1024,       # safe on v7x's 64 MiB VMEM
        ),
        cost_estimate=cost,
    )(xc, w1p, b1p, w2p, b2p)

    # Strip batch padding and the lane padding of the output features.
    return out_pad[:B, :OUT_FEATURES]


def init_params(key):
    # Deterministic synthetic init mimicking nn.Linear's default
    # uniform(-1/sqrt(fan_in), 1/sqrt(fan_in)).
    k1, k2, k3, k4 = jax.random.split(key, 4)
    bound1 = 1.0 / jnp.sqrt(IN_FEATURES)
    bound2 = 1.0 / jnp.sqrt(HIDDEN)
    w1 = jax.random.uniform(k1, (IN_FEATURES, HIDDEN), jnp.float32, -bound1, bound1)
    b1 = jax.random.uniform(k2, (HIDDEN,), jnp.float32, -bound1, bound1)
    w2 = jax.random.uniform(k3, (HIDDEN, OUT_FEATURES), jnp.float32, -bound2, bound2)
    b2 = jax.random.uniform(k4, (OUT_FEATURES,), jnp.float32, -bound2, bound2)
    return w1, b1, w2, b2


if __name__ == "__main__":
    key = jax.random.PRNGKey(0)
    kx, kp = jax.random.split(key)

    # Small test batch; tb=8 forces a 3-step grid so the pipelined /
    # VMEM-resident-weight path is actually exercised.
    batch = 24
    x = jax.random.normal(kx, (batch, IN_FEATURES), dtype=jnp.float32)
    w1, b1, w2, b2 = init_params(kp)

    out = mlp_forward(x, w1, b1, w2, b2, tb=8)
    jax.block_until_ready(out)
    assert out.shape == (batch, OUT_FEATURES)

    # Reference with identical bf16-input / f32-accumulate arithmetic.
    xb = x.astype(jnp.bfloat16)
    h_ref = jnp.maximum(
        jnp.dot(xb, w1.astype(jnp.bfloat16), preferred_element_type=jnp.float32)
        + b1[None, :], 0.0)
    ref = jnp.maximum(
        jnp.dot(h_ref.astype(jnp.bfloat16), w2.astype(jnp.bfloat16),
                preferred_element_type=jnp.float32) + b2[None, :], 0.0)
    assert jnp.allclose(out, ref, atol=1e-4, rtol=1e-4)

    # Loose sanity check against the pure-f32 forward pass.
    ref32 = jnp.maximum(
        jnp.maximum(x @ w1 + b1[None, :], 0.0) @ w2 + b2[None, :], 0.0)
    assert jnp.allclose(out, ref32, atol=5e-2, rtol=5e-2)

    print("KERNEL_OK")
</pallas_src>

<mosaic_0001>
module attributes {stable_mosaic.version = 11 : i64} {
  func.func @mlp_kernel(%arg0: i32, %arg1: memref<8x150xbf16, #tpu.memory_space<vmem>>, %arg2: memref<150x128xbf16, #tpu.memory_space<vmem>>, %arg3: memref<1x128xf32, #tpu.memory_space<vmem>>, %arg4: memref<128x128xbf16, #tpu.memory_space<vmem>>, %arg5: memref<1x128xf32, #tpu.memory_space<vmem>>, %arg6: memref<8x128xf32, #tpu.memory_space<vmem>>) attributes {dimension_semantics = [#tpu.dimension_semantics<parallel>], iteration_bounds = array<i64: 3>, scalar_prefetch = 0 : i64, scratch_operands = 0 : i64, tpu.core_type = #tpu.core_type<tc>, window_params = [{transform_indices = @transform_0, window_bounds = array<i64: 8, 150>}, {pipeline_mode = #tpu.pipeline_mode<synchronous>, transform_indices = @transform_1, window_bounds = array<i64: 150, 128>}, {pipeline_mode = #tpu.pipeline_mode<synchronous>, transform_indices = @transform_2, window_bounds = array<i64: 1, 128>}, {pipeline_mode = #tpu.pipeline_mode<synchronous>, transform_indices = @transform_3, window_bounds = array<i64: 128, 128>}, {pipeline_mode = #tpu.pipeline_mode<synchronous>, transform_indices = @transform_4, window_bounds = array<i64: 1, 128>}, {transform_indices = @transform_5, window_bounds = array<i64: 8, 128>}]} {
    %c0 = arith.constant 0 : index
    %c0_0 = arith.constant 0 : index
    %0 = vector.load %arg1[%c0, %c0_0] : memref<8x150xbf16, #tpu.memory_space<vmem>>, vector<8x150xbf16>
    %c0_1 = arith.constant 0 : index
    %c0_2 = arith.constant 0 : index
    %1 = vector.load %arg2[%c0_1, %c0_2] : memref<150x128xbf16, #tpu.memory_space<vmem>>, vector<150x128xbf16>
    %cst = arith.constant dense<0.000000e+00> : vector<8x128xf32>
    %2 = tpu.matmul %0, %1, %cst {dimension_numbers = #tpu.dot_dimension_numbers<[1], [0], [0], [1], [0, 0, 1, 1], [], []>} : vector<8x150xbf16>, vector<150x128xbf16>, vector<8x128xf32> -> vector<8x128xf32>
    %c0_3 = arith.constant 0 : index
    %c0_4 = arith.constant 0 : index
    %3 = vector.load %arg3[%c0_3, %c0_4] : memref<1x128xf32, #tpu.memory_space<vmem>>, vector<1x128xf32>
    %4 = vector.broadcast %3 : vector<1x128xf32> to vector<8x128xf32>
    %5 = arith.addf %2, %4 : vector<8x128xf32>
    %cst_5 = arith.constant 0.000000e+00 : f32
    %6 = vector.broadcast %cst_5 : f32 to vector<8x128xf32>
    %7 = arith.maximumf %5, %6 : vector<8x128xf32>
    %8 = arith.truncf %7 : vector<8x128xf32> to vector<8x128xbf16>
    %c0_6 = arith.constant 0 : index
    %c0_7 = arith.constant 0 : index
    %9 = vector.load %arg4[%c0_6, %c0_7] : memref<128x128xbf16, #tpu.memory_space<vmem>>, vector<128x128xbf16>
    %cst_8 = arith.constant dense<0.000000e+00> : vector<8x128xf32>
    %10 = tpu.matmul %8, %9, %cst_8 {dimension_numbers = #tpu.dot_dimension_numbers<[1], [0], [0], [1], [0, 0, 1, 1], [], []>} : vector<8x128xbf16>, vector<128x128xbf16>, vector<8x128xf32> -> vector<8x128xf32>
    %c0_9 = arith.constant 0 : index
    %c0_10 = arith.constant 0 : index
    %11 = vector.load %arg5[%c0_9, %c0_10] : memref<1x128xf32, #tpu.memory_space<vmem>>, vector<1x128xf32>
    %12 = vector.broadcast %11 : vector<1x128xf32> to vector<8x128xf32>
    %13 = arith.addf %10, %12 : vector<8x128xf32>
    %cst_11 = arith.constant 0.000000e+00 : f32
    %14 = vector.broadcast %cst_11 : f32 to vector<8x128xf32>
    %15 = arith.maximumf %13, %14 : vector<8x128xf32>
    %c0_12 = arith.constant 0 : index
    %c0_13 = arith.constant 0 : index
    %16 = vector.load %arg6[%c0_12, %c0_13] : memref<8x128xf32, #tpu.memory_space<vmem>>, vector<8x128xf32>
    tpu.vector_store %arg6[%c0_12, %c0_13], %15 {strides = array<i32>} : memref<8x128xf32, #tpu.memory_space<vmem>>, vector<8x128xf32>,
    return
  }
  func.func @transform_0(%arg0: i32) -> (i32, i32) {
    %c0_i32 = arith.constant 0 : i32
    %c0_i32_0 = arith.constant 0 : i32
    return %arg0, %c0_i32 : i32, i32
  }
  func.func @transform_1(%arg0: i32) -> (i32, i32) {
    %c0_i32 = arith.constant 0 : i32
    %c0_i32_0 = arith.constant 0 : i32
    %c0_i32_1 = arith.constant 0 : i32
    return %c0_i32, %c0_i32_0 : i32, i32
  }
  func.func @transform_2(%arg0: i32) -> (i32, i32) {
    %c0_i32 = arith.constant 0 : i32
    %c0_i32_0 = arith.constant 0 : i32
    %c0_i32_1 = arith.constant 0 : i32
    return %c0_i32, %c0_i32_0 : i32, i32
  }
  func.func @transform_3(%arg0: i32) -> (i32, i32) {
    %c0_i32 = arith.constant 0 : i32
    %c0_i32_0 = arith.constant 0 : i32
    %c0_i32_1 = arith.constant 0 : i32
    return %c0_i32, %c0_i32_0 : i32, i32
  }
  func.func @transform_4(%arg0: i32) -> (i32, i32) {
    %c0_i32 = arith.constant 0 : i32
    %c0_i32_0 = arith.constant 0 : i32
    %c0_i32_1 = arith.constant 0 : i32
    return %c0_i32, %c0_i32_0 : i32, i32
  }
  func.func @transform_5(%arg0: i32) -> (i32, i32) {
    %c0_i32 = arith.constant 0 : i32
    %c0_i32_0 = arith.constant 0 : i32
    return %arg0, %c0_i32 : i32, i32
  }
}

</mosaic_0001>

<llo_original>
// kernel: tpu_custom_call.1
$region0: #{tpu_custom_call.1}
  #allocation0 [shape = 'u32[]', space=smem, size = 0x4, offset = 0x4, fixed_abs, tag = 'smem constant byte address 0x4 - core index']
  #allocation1 [shape = 'u32[144,128]{1,0:T(1,128)}', space=vmem, size = 0x12000, scoped, tag = 'internal scratch']
  %s0 = inlined_call_operand.hbm [shape: bf16[24,150], index: 0, kind: input, shape index: {}]
  %s1 = inlined_call_operand.hbm [shape: bf16[150,128], index: 1, kind: input, shape index: {}]
  %s2 = inlined_call_operand.vmem [shape: f32[1,128], index: 2, kind: input, shape index: {}]
  %s3 = inlined_call_operand.hbm [shape: bf16[128,128], index: 3, kind: input, shape index: {}]
  %s4 = inlined_call_operand.vmem [shape: f32[1,128], index: 4, kind: input, shape index: {}]
  %s5 = inlined_call_operand.hbm [shape: f32[24,128], index: 5, kind: output, shape index: {}]
  %s6 = sld [smem:[#allocation0]]
  $region65: #{tpu_custom_call.1} parent=0
    _
  %s8 = ssub.s32 1, %s6
  %s9 = scalar_select 0, %s8, %s6
  $region1: #{tpu_custom_call.1} parent=0
    #allocation2 [shape = 'u8[8192]{0}', space=vmem, size = 0x2000, scoped, tag = 'input window, operand 0']
    #allocation3 [shape = 's32[2]{0}', space=sflag, size = 0x8, scoped, tag = 'scoped memory for tpu_custom_call.1']
    #allocation4 [shape = 's32[2]{0}', space=sflag, size = 0x8, scoped, tag = 'scoped memory for tpu_custom_call.1']
    #allocation5 [shape = 'u8[38912]{0}', space=vmem, size = 0x9800, scoped, tag = 'input window, operand 1, single buffered']
    #allocation6 [shape = 's32[1]{0}', space=sflag, size = 0x4, scoped, tag = 'scoped memory for tpu_custom_call.1']
    #allocation7 [shape = 'u8[32768]{0}', space=vmem, size = 0x8000, scoped, tag = 'input window, operand 3, single buffered']
    #allocation8 [shape = 'u8[8192]{0}', space=vmem, size = 0x2000, scoped, tag = 'output window, operand 0']
    %10 = vsyncpa [#allocation3], 0
    %s11 = scalar_lea.sflag [#allocation3], 1
    %12 = vsyncpa %s11, 0
    %13 = vsyncpa [#allocation6], 0
    %14 = vsyncpa [#allocation4], 0
    %s15 = scalar_lea.sflag [#allocation4], 1
    %16 = vsyncpa %s15, 0
    loop: start=0, step=1, limit=5
    $region2: #{tpu_custom_call.1} parent=1 // loop_pre_header
      _
    $region3: #{tpu_custom_call.1} parent=1 // loop_header
      %s18 = sphi 0, %s22
      %p19 = scmp.ge.s32.totalorder %s18, 5
      %s28 = sphi 0, %s30
      %s31 = sphi 0, %s28
      %s32 = sphi 0, %s31
      %s48 = sphi 0, %s32
      %s52 = sphi 0, %s52
      %s54 = sphi 0, %s52
      %s55 = sphi 0, %s54
      %s69 = sphi 0, %s55
      %s73 = sphi 0, %s73
      %s75 = sphi 0, %s73
      %s76 = sphi 0, %s75
      %s90 = sphi 0, %s76
      %s94 = sphi 0, %s94
      %s96 = sphi 0, %s94
      %s97 = sphi 0, %s96
      %s111 = sphi 0, %s97
      %s115 = sphi 0, %s115
      %s117 = sphi 0, %s115
      %s118 = sphi 0, %s117
      %s132 = sphi 0, %s118
      %s138 = sphi 0, %s140
      %s141 = sphi 0, %s138
      %s142 = sphi 0, %s141
      %s158 = sphi 0, %s142
    $region4: #{tpu_custom_call.1} parent=1 // loop_header_branch
      %21 = sbr.rel (%p19) target = $region8
    $region5: #{tpu_custom_call.1} parent=1 // loop_body
      %s23 = ssub.s32 %s18, 1
      %s24 = ssub.s32 %s18, 2
      %s25 = sadd.s32 %s18, 1
      %s26 = ssub.s32 %s18, %s25
      %p27 = scmp.eq.s32.totalorder %s26, 0
      %s29 = sadd.s32 %s28, 1
      %s30 = scalar_select %p27, %s28, %s29
      %p33 = pneg %p27
      %p34 = scmp.eq.s32.totalorder %s18, 2
      %p35 = por %p33, %p34
      %p36 = scmp.ne.s32.totalorder %s28, %s31
      %p37 = scmp.eq.s32.totalorder %s18, 0
      %p38 = por %p36, %p37
      %p39 = scmp.ne.s32.totalorder %s28, %s31
      %p40 = scmp.eq.s32.totalorder %s23, 2
      %p41 = por %p39, %p40
      %p42 = scmp.ne.s32.totalorder %s31, %s32
      %p43 = scmp.eq.s32.totalorder %s23, 0
      %p44 = por %p42, %p43
      %p45 = scmp.ne.s32.totalorder %s31, %s32
      %p46 = scmp.eq.s32.totalorder %s24, 2
      %p47 = por %p45, %p46
      %p49 = scmp.ne.s32.totalorder %s32, %s48
      %p50 = scmp.eq.s32.totalorder %s24, 0
      %p51 = por %p49, %p50
      %s53 = sadd.s32 %s52, 1
      %p56 = scmp.eq.s32.totalorder %s18, 2
      %p57 = scmp.ne.s32.totalorder %s52, %s54
      %p58 = scmp.eq.s32.totalorder %s18, 0
      %p59 = por %p57, %p58
      %p60 = scmp.ne.s32.totalorder %s52, %s54
      %p61 = scmp.eq.s32.totalorder %s23, 2
      %p62 = por %p60, %p61
      %p63 = scmp.ne.s32.totalorder %s54, %s55
      %p64 = scmp.eq.s32.totalorder %s23, 0
      %p65 = por %p63, %p64
      %p66 = scmp.ne.s32.totalorder %s54, %s55
      %p67 = scmp.eq.s32.totalorder %s24, 2
      %p68 = por %p66, %p67
      %p70 = scmp.ne.s32.totalorder %s55, %s69
      %p71 = scmp.eq.s32.totalorder %s24, 0
      %p72 = por %p70, %p71
      %s74 = sadd.s32 %s73, 1
      %p77 = scmp.eq.s32.totalorder %s18, 2
      %p78 = scmp.ne.s32.totalorder %s73, %s75
      %p79 = scmp.eq.s32.totalorder %s18, 0
      %p80 = por %p78, %p79
      %p81 = scmp.ne.s32.totalorder %s73, %s75
      %p82 = scmp.eq.s32.totalorder %s23, 2
      %p83 = por %p81, %p82
      %p84 = scmp.ne.s32.totalorder %s75, %s76
      %p85 = scmp.eq.s32.totalorder %s23, 0
      %p86 = por %p84, %p85
      %p87 = scmp.ne.s32.totalorder %s75, %s76
      %p88 = scmp.eq.s32.totalorder %s24, 2
      %p89 = por %p87, %p88
      %p91 = scmp.ne.s32.totalorder %s76, %s90
      %p92 = scmp.eq.s32.totalorder %s24, 0
      %p93 = por %p91, %p92
      %s95 = sadd.s32 %s94, 1
      %p98 = scmp.eq.s32.totalorder %s18, 2
      %p99 = scmp.ne.s32.totalorder %s94, %s96
      %p100 = scmp.eq.s32.totalorder %s18, 0
      %p101 = por %p99, %p100
      %p102 = scmp.ne.s32.totalorder %s94, %s96
      %p103 = scmp.eq.s32.totalorder %s23, 2
      %p104 = por %p102, %p103
      %p105 = scmp.ne.s32.totalorder %s96, %s97
      %p106 = scmp.eq.s32.totalorder %s23, 0
      %p107 = por %p105, %p106
      %p108 = scmp.ne.s32.totalorder %s96, %s97
      %p109 = scmp.eq.s32.totalorder %s24, 2
      %p110 = por %p108, %p109
      %p112 = scmp.ne.s32.totalorder %s97, %s111
      %p113 = scmp.eq.s32.totalorder %s24, 0
      %p114 = por %p112, %p113
      %s116 = sadd.s32 %s115, 1
      %p119 = scmp.eq.s32.totalorder %s18, 2
      %p120 = scmp.ne.s32.totalorder %s115, %s117
      %p121 = scmp.eq.s32.totalorder %s18, 0
      %p122 = por %p120, %p121
      %p123 = scmp.ne.s32.totalorder %s115, %s117
      %p124 = scmp.eq.s32.totalorder %s23, 2
      %p125 = por %p123, %p124
      %p126 = scmp.ne.s32.totalorder %s117, %s118
      %p127 = scmp.eq.s32.totalorder %s23, 0
      %p128 = por %p126, %p127
      %p129 = scmp.ne.s32.totalorder %s117, %s118
      %p130 = scmp.eq.s32.totalorder %s24, 2
      %p131 = por %p129, %p130
      %p133 = scmp.ne.s32.totalorder %s118, %s132
      %p134 = scmp.eq.s32.totalorder %s24, 0
      %p135 = por %p133, %p134
      %s136 = ssub.s32 %s18, %s25
      %p137 = scmp.eq.s32.totalorder %s136, 0
      %s139 = sadd.s32 %s138, 1
      %s140 = scalar_select %p137, %s138, %s139
      %p143 = pneg %p137
      %p144 = scmp.eq.s32.totalorder %s18, 2
      %p145 = por %p143, %p144
      %p146 = scmp.ne.s32.totalorder %s138, %s141
      %p147 = scmp.eq.s32.totalorder %s18, 0
      %p148 = por %p146, %p147
      %p149 = scmp.ne.s32.totalorder %s138, %s141
      %p150 = scmp.eq.s32.totalorder %s23, 2
      %p151 = por %p149, %p150
      %p152 = scmp.ne.s32.totalorder %s141, %s142
      %p153 = scmp.eq.s32.totalorder %s23, 0
      %p154 = por %p152, %p153
      %p155 = scmp.ne.s32.totalorder %s141, %s142
      %p156 = scmp.eq.s32.totalorder %s24, 2
      %p157 = por %p155, %p156
      %p159 = scmp.ne.s32.totalorder %s142, %s158
      %p160 = scmp.eq.s32.totalorder %s24, 0
      %p161 = por %p159, %p160
      %p162 = scmp.le.s32.totalorder 1, %s18
      %p163 = scmp.lt.s32.totalorder %s18, 4
      %p164 = pnand %p162, %p163
      %p165 = pneg %p164
      // Predicated region
      $region9: #{tpu_custom_call.1} parent=5 // pred_check
        _
      $region10: #{tpu_custom_call.1} parent=5 // pred_check_branch
        %167 = sbr.rel (%p164) target = $region12
      $region11: #{tpu_custom_call.1} parent=5 // pred_region
        %s168 = ssub.s32 %s18, 1
        // Predicated region
        $region13: #{tpu_custom_call.1} parent=11 // pred_check
          %p169 = pneg %p65
        $region14: #{tpu_custom_call.1} parent=11 // pred_check_branch
          %171 = sbr.rel (%p169) target = $region16
        $region15: #{tpu_custom_call.1} parent=11 // pred_region
          %s173 = ssub.s32 1216, 1216
          %174 = vsyncadd [#allocation6], %s173
          %s175 = sshll.u32 [#allocation5], 4
          %s176 = int_to_ptr.vmem [resolvable:$true] %s175
          %181 = dma.hbm_to_vmem [thread:$0]  %s1, 1216, %s176, [#allocation6], 64, 64, 4
        $region16: #{tpu_custom_call.1} parent=11 // pred_fallthru
          _
        // Predicated region
        $region17: #{tpu_custom_call.1} parent=11 // pred_check
          %p182 = pneg %p86
        $region18: #{tpu_custom_call.1} parent=11 // pred_check_branch
          %184 = sbr.rel (%p182) target = $region20
        $region19: #{tpu_custom_call.1} parent=11 // pred_region
          _
        $region20: #{tpu_custom_call.1} parent=11 // pred_fallthru
          _
        // Predicated region
        $region21: #{tpu_custom_call.1} parent=11 // pred_check
          %p185 = pneg %p107
        $region22: #{tpu_custom_call.1} parent=11 // pred_check_branch
          %187 = sbr.rel (%p185) target = $region24
        $region23: #{tpu_custom_call.1} parent=11 // pred_region
          %s189 = ssub.s32 1024, 1024
          %190 = vsyncadd [#allocation6], %s189
          %s191 = sshll.u32 [#allocation7], 4
          %s192 = int_to_ptr.vmem [resolvable:$true] %s191
          %197 = dma.hbm_to_vmem [thread:$0]  %s3, 1024, %s192, [#allocation6], 64, 64, 4
        $region24: #{tpu_custom_call.1} parent=11 // pred_fallthru
          _
        // Predicated region
        $region25: #{tpu_custom_call.1} parent=11 // pred_check
          %p198 = pneg %p128
        $region26: #{tpu_custom_call.1} parent=11 // pred_check_branch
          %200 = sbr.rel (%p198) target = $region28
        $region27: #{tpu_custom_call.1} parent=11 // pred_region
          _
        $region28: #{tpu_custom_call.1} parent=11 // pred_fallthru
          _
      $region12: #{tpu_custom_call.1} parent=5 // pred_fallthru
        _
      %p201 = scmp.lt.s32.totalorder %s18, 3
      // Predicated region
      $region29: #{tpu_custom_call.1} parent=5 // pred_check
        %p202 = pneg %p201
      $region30: #{tpu_custom_call.1} parent=5 // pred_check_branch
        %204 = sbr.rel (%p202) target = $region32
      $region31: #{tpu_custom_call.1} parent=5 // pred_region
        // Predicated region
        $region33: #{tpu_custom_call.1} parent=31 // pred_check
          %p205 = pneg %p38
        $region34: #{tpu_custom_call.1} parent=31 // pred_check_branch
          %207 = sbr.rel (%p205) target = $region36
        $region35: #{tpu_custom_call.1} parent=31 // pred_region
          %s208 = sand.u32 %s28, 1
          %s209 = scalar_lea.sflag [#allocation3], %s208
          %s210 = sand.u32 %s28, 1
          %s211 = smul.addr %s210, 8
          %s212 = scalar_lea.vmem [#allocation2], %s211
          %s214 = ssub.s32 128, 128
          %215 = vsyncadd %s209, %s214
          %s216 = smul.addr %s18, 2
          %s217 = smul.addr %s216, 64
          %s218 = scalar_lea.hbm %s0, %s217
          %s220 = sshll.u32 %s212, 4
          %s221 = int_to_ptr.vmem [resolvable:$true] %s220
          %223 = dma.hbm_to_vmem [thread:$0]  %s218, 128, %s221, %s209
        $region36: #{tpu_custom_call.1} parent=31 // pred_fallthru
          _
      $region32: #{tpu_custom_call.1} parent=5 // pred_fallthru
        _
      %p224 = scmp.le.s32.totalorder 1, %s18
      %p225 = scmp.lt.s32.totalorder %s18, 4
      %p226 = pnand %p224, %p225
      %p227 = pneg %p226
      // Predicated region
      $region37: #{tpu_custom_call.1} parent=5 // pred_check
        _
      $region38: #{tpu_custom_call.1} parent=5 // pred_check_branch
        %229 = sbr.rel (%p226) target = $region40
      $region39: #{tpu_custom_call.1} parent=5 // pred_region
        %s230 = ssub.s32 %s18, 1
        %s231 = sand.u32 %s31, 1
        %s232 = scalar_lea.sflag [#allocation3], %s231
        %s233 = sand.u32 %s31, 1
        %s234 = smul.addr %s233, 8
        %s235 = scalar_lea.vmem [#allocation2], %s234
        // Predicated region
        $region41: #{tpu_custom_call.1} parent=39 // pred_check
          %p236 = pneg %p44
        $region42: #{tpu_custom_call.1} parent=39 // pred_check_branch
          %238 = sbr.rel (%p236) target = $region44
        $region43: #{tpu_custom_call.1} parent=39 // pred_region
          %239 = dma.done %s232, 128
        $region44: #{tpu_custom_call.1} parent=39 // pred_fallthru
          _
        // Predicated region
        $region45: #{tpu_custom_call.1} parent=39 // pred_check
          %p240 = pneg %p65
        $region46: #{tpu_custom_call.1} parent=39 // pred_check_branch
          %242 = sbr.rel (%p240) target = $region48
        $region47: #{tpu_custom_call.1} parent=39 // pred_region
          %243 = dma.done [#allocation6], 1216
        $region48: #{tpu_custom_call.1} parent=39 // pred_fallthru
          _
        // Predicated region
        $region49: #{tpu_custom_call.1} parent=39 // pred_check
          %p244 = pneg %p107
        $region50: #{tpu_custom_call.1} parent=39 // pred_check_branch
          %246 = sbr.rel (%p244) target = $region52
        $region51: #{tpu_custom_call.1} parent=39 // pred_region
          %247 = dma.done [#allocation6], 1024
        $region52: #{tpu_custom_call.1} parent=39 // pred_fallthru
          _
        %s248 = sand.u32 %s31, 1
        %s249 = scalar_lea.sflag [#allocation3], %s248
        %s250 = sand.u32 %s31, 1
        %s251 = smul.addr %s250, 8
        %s252 = scalar_lea.vmem [#allocation2], %s251
        %p253 = pneg %p44
        %p254 = pneg %p41
        %p255 = pneg %p65
        %p256 = pneg %p62
        %p257 = pneg %p86
        %p258 = pneg %p83
        %p259 = pneg %p107
        %p260 = pneg %p104
        %p261 = pneg %p128
        %p262 = pneg %p125
        %p263 = pneg %p154
        %p264 = pneg %p151
        %s265 = sand.u32 %s141, 1
        %s266 = scalar_lea.sflag [#allocation4], %s265
        %s267 = sand.u32 %s141, 1
        %s268 = smul.addr %s267, 8
        %s269 = scalar_lea.vmem [#allocation8], %s268
        %v271 = vld [vmem:[%s235] sm:$0xff]
        %v272 = vld [vmem:[#allocation5] sm:$0xf]
        %v273 = vld [vmem:[#allocation5 + $0x4] sm:$0xf]
        %v274 = vld [vmem:[#allocation5 + $0x8] sm:$0xf]
        %v275 = vld [vmem:[#allocation5 + $0xc] sm:$0xf]
        %v276 = vld [vmem:[#allocation5 + $0x10] sm:$0xf]
        %v277 = vld [vmem:[#allocation5 + $0x14] sm:$0xf]
        %v278 = vld [vmem:[#allocation5 + $0x18] sm:$0xf]
        %v279 = vld [vmem:[#allocation5 + $0x1c] sm:$0xf]
        %v280 = vld [vmem:[#allocation5 + $0x20] sm:$0xf]
        %v281 = vld [vmem:[#allocation5 + $0x24] sm:$0xf]
        %v282 = vld [vmem:[#allocation5 + $0x28] sm:$0xf]
        %v283 = vld [vmem:[#allocation5 + $0x2c] sm:$0xf]
        %v284 = vld [vmem:[#allocation5 + $0x30] sm:$0xf]
        %v285 = vld [vmem:[#allocation5 + $0x34] sm:$0xf]
        %v286 = vld [vmem:[#allocation5 + $0x38] sm:$0xf]
        %v287 = vld [vmem:[#allocation5 + $0x3c] sm:$0xf]
        %v288 = vld [vmem:[#allocation5 + $0x40] sm:$0xf]
        %v289 = vld [vmem:[#allocation5 + $0x44] sm:$0xf]
        %v290 = vld [vmem:[#allocation5 + $0x48] sm:$0x7]
        %v291 = vld [vmem:[%s2] sm:$0x1]
        %v293 = vlaneseq
        %v294 = vshrl.u32 %v293, 7
        %v295 = vsub.s32 0, %v294
        %v296 = vrot.slane %v291, %v295
        %v299 = vunpack.c.l.b16 %v271
        %v300 = vunpack.c.h.b16 %v271
        %v301 = vpack.c.b16 %v299, %v299
        %v302 = vpack.c.b16 %v300, %v300
        %v323 = vunpack.c.l.b16 %v272
        %v324 = vunpack.c.l.b16 %v273
        %v325 = vunpack.c.l.b16 %v274
        %v326 = vunpack.c.l.b16 %v275
        %v327 = vunpack.c.l.b16 %v276
        %v328 = vunpack.c.l.b16 %v277
        %v329 = vunpack.c.l.b16 %v278
        %v330 = vunpack.c.l.b16 %v279
        %v331 = vunpack.c.l.b16 %v280
        %v332 = vunpack.c.l.b16 %v281
        %v333 = vunpack.c.l.b16 %v282
        %v334 = vunpack.c.l.b16 %v283
        %v335 = vunpack.c.l.b16 %v284
        %v336 = vunpack.c.l.b16 %v285
        %v337 = vunpack.c.l.b16 %v286
        %v338 = vunpack.c.l.b16 %v287
        %v339 = vunpack.c.l.b16 %v288
        %v340 = vunpack.c.l.b16 %v289
        %v341 = vunpack.c.l.b16 %v290
        %v342 = vpack.c.b16 %v324, %v323
        %v343 = vpack.c.b16 %v326, %v325
        %v344 = vpack.c.b16 %v328, %v327
        %v345 = vpack.c.b16 %v330, %v329
        %v346 = vpack.c.b16 %v332, %v331
        %v347 = vpack.c.b16 %v334, %v333
        %v348 = vpack.c.b16 %v336, %v335
        %v349 = vpack.c.b16 %v338, %v337
        %v350 = vpack.c.b16 %v340, %v339
        %v351 = vpack.c.b16 %v341, %v341
        %vm361 = vcmask 179200
        %v363 = vsel %vm361, %v302, 0
        %vm365 = vcmask 1042432
        %v367 = vsel %vm365, %v351, 0
        %369 = vmatprep.subr.bf16.mxu0 0
        %370 = vmatpush1.bf16.msra.mxu0 %v349
        %371 = vmatprep.subr.bf16.mxu0 0
        %372 = vmatpush1.bf16.msra.mxu0 %v348
        %373 = vmatprep.subr.bf16.mxu0 0
        %374 = vmatpush1.bf16.msra.mxu0 %v347
        %375 = vmatprep.subr.bf16.mxu0 0
        %376 = vmatpush1.bf16.msra.mxu0 %v346
        %377 = vmatprep.subr.bf16.mxu0 0
        %378 = vmatpush1.bf16.msra.mxu0 %v345
        %379 = vmatprep.subr.bf16.mxu0 0
        %380 = vmatpush1.bf16.msra.mxu0 %v344
        %381 = vmatprep.subr.bf16.mxu0 0
        %382 = vmatpush1.bf16.msra.mxu0 %v343
        %383 = vmatprep.subr.bf16.mxu0 0
        %384 = vmatpush1.bf16.msra.mxu0 %v342
        %385 = vmatprep.subr.bf16.mxu0 0
        %386 = vmatpush2.bf16.msra.mxu0 0
        %387 = vmatprep.subr.bf16.mxu0 0
        %388 = vmatpush2.bf16.msra.mxu0 0
        %389 = vmatprep.subr.bf16.mxu0 0
        %390 = vmatpush2.bf16.msra.mxu0 0
        %391 = vmatprep.subr.bf16.mxu0 0
        %392 = vmatpush2.bf16.msra.mxu0 0
        %393 = vmatprep.subr.bf16.mxu0 0
        %394 = vmatpush2.bf16.msra.mxu0 0
        %395 = vmatprep.subr.bf16.mxu0 0
        %396 = vmatpush2.bf16.msra.mxu0 0
        %397 = vmatprep.subr.bf16.mxu0 0
        %398 = vmatpush2.bf16.msra.mxu0 %v367
        %399 = vmatprep.subr.bf16.mxu0 0
        %400 = vmatpush2.bf16.msra.mxu0 %v350
        %401 = vmatprep.mubr.bf16.mxu0 %v363
        %402 = vmatmul.mubr.bf16.gmra.mxu0 %v301
        %v403 = vpop.f32.mrf.mxu0
        %v404 = vadd.f32 %v296, %v403
        %v405 = vpop.f32.mrf.mxu0
        %v406 = vpop.f32.mrf.mxu0
        %v407 = vpop.f32.mrf.mxu0
        %408 = vdwg.mxu0
        %v409 = vmax.f32 %v404, 0.0
        %v410 = vpack.c.bf16 %v409, %v409
        %v411 = vld [vmem:[#allocation7] sm:$0xf]
        %v412 = vld [vmem:[#allocation7 + $0x4] sm:$0xf]
        %v413 = vld [vmem:[#allocation7 + $0x8] sm:$0xf]
        %v414 = vld [vmem:[#allocation7 + $0xc] sm:$0xf]
        %v415 = vld [vmem:[#allocation7 + $0x10] sm:$0xf]
        %v416 = vld [vmem:[#allocation7 + $0x14] sm:$0xf]
        %v417 = vld [vmem:[#allocation7 + $0x18] sm:$0xf]
        %v418 = vld [vmem:[#allocation7 + $0x1c] sm:$0xf]
        %v419 = vld [vmem:[#allocation7 + $0x20] sm:$0xf]
        %v420 = vld [vmem:[#allocation7 + $0x24] sm:$0xf]
        %v421 = vld [vmem:[#allocation7 + $0x28] sm:$0xf]
        %v422 = vld [vmem:[#allocation7 + $0x2c] sm:$0xf]
        %v423 = vld [vmem:[#allocation7 + $0x30] sm:$0xf]
        %v424 = vld [vmem:[#allocation7 + $0x34] sm:$0xf]
        %v425 = vld [vmem:[#allocation7 + $0x38] sm:$0xf]
        %v426 = vld [vmem:[#allocation7 + $0x3c] sm:$0xf]
        %v427 = vld [vmem:[%s4] sm:$0x1]
        %v429 = vlaneseq
        %v430 = vshrl.u32 %v429, 7
        %v431 = vsub.s32 0, %v430
        %v432 = vrot.slane %v427, %v431
        %v450 = vunpack.c.l.b16 %v411
        %v451 = vunpack.c.l.b16 %v412
        %v452 = vunpack.c.l.b16 %v413
        %v453 = vunpack.c.l.b16 %v414
        %v454 = vunpack.c.l.b16 %v415
        %v455 = vunpack.c.l.b16 %v416
        %v456 = vunpack.c.l.b16 %v417
        %v457 = vunpack.c.l.b16 %v418
        %v458 = vunpack.c.l.b16 %v419
        %v459 = vunpack.c.l.b16 %v420
        %v460 = vunpack.c.l.b16 %v421
        %v461 = vunpack.c.l.b16 %v422
        %v462 = vunpack.c.l.b16 %v423
        %v463 = vunpack.c.l.b16 %v424
        %v464 = vunpack.c.l.b16 %v425
        %v465 = vunpack.c.l.b16 %v426
        %v466 = vpack.c.b16 %v451, %v450
        %v467 = vpack.c.b16 %v453, %v452
        %v468 = vpack.c.b16 %v455, %v454
        %v469 = vpack.c.b16 %v457, %v456
        %v470 = vpack.c.b16 %v459, %v458
        %v471 = vpack.c.b16 %v461, %v460
        %v472 = vpack.c.b16 %v463, %v462
        %v473 = vpack.c.b16 %v465, %v464
        %482 = vmatprep.subr.bf16.mxu0 0
        %483 = vmatpush1.bf16.msra.mxu0 %v473
        %484 = vmatprep.subr.bf16.mxu0 0
        %485 = vmatpush1.bf16.msra.mxu0 %v472
        %486 = vmatprep.subr.bf16.mxu0 0
        %487 = vmatpush1.bf16.msra.mxu0 %v471
        %488 = vmatprep.subr.bf16.mxu0 0
        %489 = vmatpush1.bf16.msra.mxu0 %v470
        %490 = vmatprep.subr.bf16.mxu0 0
        %491 = vmatpush1.bf16.msra.mxu0 %v469
        %492 = vmatprep.subr.bf16.mxu0 0
        %493 = vmatpush1.bf16.msra.mxu0 %v468
        %494 = vmatprep.subr.bf16.mxu0 0
        %495 = vmatpush1.bf16.msra.mxu0 %v467
        %496 = vmatprep.subr.bf16.mxu0 0
        %497 = vmatpush1.bf16.msra.mxu0 %v466
        %498 = vmatprep.subr.bf16.mxu0 0
        %499 = vmatpush2.bf16.msra.mxu0 0
        %500 = vmatprep.subr.bf16.mxu0 0
        %501 = vmatpush2.bf16.msra.mxu0 0
        %502 = vmatprep.subr.bf16.mxu0 0
        %503 = vmatpush2.bf16.msra.mxu0 0
        %504 = vmatprep.subr.bf16.mxu0 0
        %505 = vmatpush2.bf16.msra.mxu0 0
        %506 = vmatprep.subr.bf16.mxu0 0
        %507 = vmatpush2.bf16.msra.mxu0 0
        %508 = vmatprep.subr.bf16.mxu0 0
        %509 = vmatpush2.bf16.msra.mxu0 0
        %510 = vmatprep.subr.bf16.mxu0 0
        %511 = vmatpush2.bf16.msra.mxu0 0
        %512 = vmatprep.subr.bf16.mxu0 0
        %513 = vmatpush2.bf16.msra.mxu0 0
        %514 = vmatprep.mubr.bf16.mxu0 0
        %515 = vmatmul.mubr.bf16.gmra.mxu0 %v410
        %v516 = vpop.f32.mrf.mxu0
        %v517 = vadd.f32 %v432, %v516
        %v518 = vpop.f32.mrf.mxu0
        %v519 = vpop.f32.mrf.mxu0
        %v520 = vpop.f32.mrf.mxu0
        %521 = vdwg.mxu0
        %v522 = vmax.f32 %v517, 0.0
        %523 = vst [vmem:[%s269] sm:$0xff] %v522
        %s524 = sand.u32 %s141, 1
        %s525 = scalar_lea.sflag [#allocation4], %s524
        %s526 = sand.u32 %s141, 1
        %s527 = smul.addr %s526, 8
        %s528 = scalar_lea.vmem [#allocation8], %s527
        // Predicated region
        $region53: #{tpu_custom_call.1} parent=39 // pred_check
          %p529 = pneg %p151
        $region54: #{tpu_custom_call.1} parent=39 // pred_check_branch
          %531 = sbr.rel (%p529) target = $region56
        $region55: #{tpu_custom_call.1} parent=39 // pred_region
          %s533 = ssub.s32 128, 128
          %534 = vsyncadd %s525, %s533
          %s535 = smul.addr %s23, 128
          %s536 = scalar_lea.hbm %s5, %s535
          %s538 = sshll.u32 %s528, 4
          %s539 = int_to_ptr.vmem [resolvable:$true] %s538
          %541 = dma.vmem_to_hbm [thread:$0]  %s539, 128, %s536, %s525
        $region56: #{tpu_custom_call.1} parent=39 // pred_fallthru
          _
      $region40: #{tpu_custom_call.1} parent=5 // pred_fallthru
        _
      %p542 = scmp.le.s32.totalorder 2, %s18
      // Predicated region
      $region57: #{tpu_custom_call.1} parent=5 // pred_check
        %p543 = pneg %p542
      $region58: #{tpu_custom_call.1} parent=5 // pred_check_branch
        %545 = sbr.rel (%p543) target = $region60
      $region59: #{tpu_custom_call.1} parent=5 // pred_region
        %s546 = ssub.s32 %s18, 2
        // Predicated region
        $region61: #{tpu_custom_call.1} parent=59 // pred_check
          %p547 = pneg %p157
        $region62: #{tpu_custom_call.1} parent=59 // pred_check_branch
          %549 = sbr.rel (%p547) target = $region64
        $region63: #{tpu_custom_call.1} parent=59 // pred_region
          %s550 = sand.u32 %s142, 1
          %s551 = scalar_lea.sflag [#allocation4], %s550
          %s552 = sand.u32 %s142, 1
          %s553 = smul.addr %s552, 8
          %s554 = scalar_lea.vmem [#allocation8], %s553
          %555 = dma.done %s551, 128
        $region64: #{tpu_custom_call.1} parent=59 // pred_fallthru
          _
      $region60: #{tpu_custom_call.1} parent=5 // pred_fallthru
        _
    $region6: #{tpu_custom_call.1} parent=1 // loop_footer
      %s22 = sadd.s32 1, %s18
    $region7: #{tpu_custom_call.1} parent=1 // loop_footer_branch
      %17 = sbr.rel target = $region3
    $region8: #{tpu_custom_call.1} parent=1 // loop_exit
      _
    %556 = vsyncpa [#allocation3], 1
    %s557 = scalar_lea.sflag [#allocation3], 1
    %558 = vsyncpa %s557, 1
    %559 = vsyncpa [#allocation6], 1
    %560 = vsyncpa [#allocation4], 1
    %s561 = scalar_lea.sflag [#allocation4], 1
    %562 = vsyncpa %s561, 1

</llo_original>
